<compile_context>
chip_gen: v6e
topology: v6e:2x2x1
jax: 0.10.0
libtpu: 0.0.40
codegen_flags: <defaults>
</compile_context>

<pallas_src>
import math

import jax
import jax.numpy as jnp
from jax import lax
from jax.experimental import pallas as pl
from jax.experimental.pallas import tpu as pltpu

_EPS = 1e-12  # F.normalize default eps


def _round_up(x, mult):
    return ((x + mult - 1) // mult) * mult


def _make_arcface_kernel(s, m, easy_margin, weight_prenormalized):
    cos_m = math.cos(m)
    sin_m = math.sin(m)
    th = math.cos(math.pi - m)
    mm = math.sin(math.pi - m) * m

    def kernel(xn_ref, w_ref, label_ref, out_ref):
        j = pl.program_id(0)                     # class-tile index (outer axis)

        x_nb = xn_ref[...]                       # (TB, E) bf16, pre-normalized rows
        label = label_ref[...]                   # (TB, 1) int32

        if weight_prenormalized:
            # Weight already has unit rows (e.g. bf16 copy made once per epoch /
            # per model load): just feed the MXU.
            w_b = w_ref[...].astype(jnp.bfloat16)
        else:
            # F.normalize(kernel, dim=1) on this tile via EUP rsqrt:
            #   inv_n = rsqrt(max(sum(w^2), eps^2))  (clamp on the *squared* sum)
            w32 = w_ref[...].astype(jnp.float32)              # (TC, E)
            sumsq = jnp.sum(w32 * w32, axis=1, keepdims=True)  # (TC, 1)  XLU reduce
            inv_n = lax.rsqrt(jnp.maximum(sumsq, _EPS * _EPS))  # (TC, 1)  EUP
            w_b = (w32 * inv_n).astype(jnp.bfloat16)

        # cosine = x_n @ w_n.T as a last-dim contraction (no in-kernel transpose);
        # bf16 operands, f32 accumulation on the MXU.
        cosine = lax.dot_general(
            x_nb, w_b,
            dimension_numbers=(((1,), (1,)), ((), ())),
            preferred_element_type=jnp.float32,
        )                                        # (TB, TC) f32

        TB, TC = cosine.shape

        # Local label id for this class tile: (TB,1) subtract instead of adding
        # j*TC to the full (TB,TC) iota.
        local_label = label - j * TC
        col_ids = lax.broadcasted_iota(jnp.int32, (TB, TC), 1)
        one_hot = col_ids == local_label         # (TB, TC) bool

        # phi only matters at the label column: gather that cosine (TB,1) and do
        # the sqrt/margin math on TB values instead of TB*TC.
        lab_cos = jnp.sum(jnp.where(one_hot, cosine, 0.0), axis=1, keepdims=True)
        sine = jnp.sqrt(jnp.clip(1.0 - lab_cos * lab_cos, 0.0, 1.0))
        phi = lab_cos * cos_m - sine * sin_m
        if easy_margin:
            phi = jnp.where(lab_cos > 0, phi, lab_cos)
        else:
            phi = jnp.where(lab_cos - th > 0, phi, lab_cos - mm)

        out_ref[...] = (jnp.where(one_hot, phi, cosine) * s).astype(out_ref.dtype)

    return kernel


def prenormalize_weight(weight, dtype=jnp.bfloat16):
    """Make a row-normalized (bf16 by default) copy of the classifier weight.

    Do this ONCE for long-lived weights (inference / repeated forwards) and pass
    it with weight_prenormalized=True: it halves the dominant HBM weight-stream
    bytes. Do NOT do it per call (the extra cast pass costs more HBM traffic
    than it saves).
    """
    w32 = weight.astype(jnp.float32)
    inv = lax.rsqrt(jnp.maximum(jnp.sum(w32 * w32, axis=1, keepdims=True),
                                _EPS * _EPS))
    return (w32 * inv).astype(dtype)


def arcface_forward(x, weight, label, *, s=32.0, m=0.5, easy_margin=False,
                    class_tile=None, batch_tile=None,
                    out_dtype=jnp.float32, weight_prenormalized=False,
                    vmem_limit_bytes=None):
    """x: (B, E), weight: (C, E), label: (B,) int -> (B, C) logits * s."""
    B, E = x.shape
    C, E2 = weight.shape
    assert E == E2, "embedding size mismatch"

    # ---- tile sizing -------------------------------------------------------
    # Lane-dense class tile. Default: big enough to amortize the ~0.35 us/step
    # overhead (>=512 preferred when C allows), capped at 1024 for v7x's 64 MiB
    # VMEM, and sized to leave >= ~4 class tiles for megacore sharding.
    # Sweep 512/1024/2048 per shape on v5e/v6e (raise vmem_limit_bytes there).
    if class_tile is None:
        class_tile = min(1024, max(128, _round_up(pl.cdiv(C, 4), 128)))
    else:
        class_tile = max(128, _round_up(int(class_tile), 128))
    class_tile = min(class_tile, _round_up(C, 128))

    # Batch tile bounds the (TB,TC) temporaries / output double buffer; class is
    # the outer grid axis so the weight tile stays resident across batch steps.
    if batch_tile is None:
        batch_tile = B if B <= 512 else 512
    batch_tile = min(int(batch_tile), B)
    if batch_tile < B:
        batch_tile = max(8, (batch_tile // 8) * 8)

    grid = (pl.cdiv(C, class_tile), pl.cdiv(B, batch_tile))

    # ---- wrapper-side prep (hoisted out of the per-tile loop) --------------
    label2d = label.reshape(B, 1).astype(jnp.int32)

    # Normalize x once (it is only B x E) and cast to bf16 once: the class grid
    # axis stays cleanly parallel and the resident x footprint is halved.
    x32 = x.astype(jnp.float32)
    inv_x = lax.rsqrt(jnp.maximum(jnp.sum(x32 * x32, axis=1, keepdims=True),
                                  _EPS * _EPS))
    x_nb = (x32 * inv_x).astype(jnp.bfloat16)

    # ---- explicit scoped-VMEM budget (defaults: 16 MiB v5e / 32 MiB v6e,v7x) --
    if vmem_limit_bytes is None:
        w_item = jnp.dtype(weight.dtype).itemsize
        o_item = jnp.dtype(out_dtype).itemsize
        bt, ct = batch_tile, class_tile
        est = (2 * ct * E * w_item            # double-buffered weight stream
               + 2 * bt * ct * o_item         # double-buffered output tile
               + 2 * bt * E * 2 + 2 * bt * 4  # resident bf16 x + label
               + ct * E * (4 + 2)             # in-kernel w32 / w_b temporaries
               + bt * ct * (4 + 4 + 1))       # cosine f32 + iota i32 + one_hot
        vmem_limit_bytes = int(min(96 << 20, max(32 << 20, 2 * est)))

    kernel = _make_arcface_kernel(s, m, easy_margin, weight_prenormalized)

    return pl.pallas_call(
        kernel,
        out_shape=jax.ShapeDtypeStruct((B, C), out_dtype),
        grid_spec=pltpu.PrefetchScalarGridSpec(
            num_scalar_prefetch=0,
            grid=grid,
            in_specs=[
                # x / label follow the inner batch axis; the weight tile follows
                # only the outer class axis (fetched once per class tile, default
                # double buffering -- the stream is bandwidth-bound).
                pl.BlockSpec((batch_tile, E), lambda j, i: (i, 0)),
                pl.BlockSpec((class_tile, E), lambda j, i: (j, 0)),
                pl.BlockSpec((batch_tile, 1), lambda j, i: (i, 0)),
            ],
            out_specs=pl.BlockSpec((batch_tile, class_tile),
                                   lambda j, i: (i, j)),
        ),
        compiler_params=pltpu.CompilerParams(
            dimension_semantics=("parallel", "parallel"),
            vmem_limit_bytes=vmem_limit_bytes),
    )(x_nb, weight, label2d)


def xavier_uniform(key, out_feature, in_feature):
    # nn.init.xavier_uniform_ on a (out, in) tensor: bound = sqrt(6/(fan_in+fan_out))
    bound = math.sqrt(6.0 / (in_feature + out_feature))
    return jax.random.uniform(key, (out_feature, in_feature), dtype=jnp.float32,
                              minval=-bound, maxval=bound)


def _arcface_reference(x, weight, label, *, s, m, easy_margin):
    """Pure-JAX f32 reference with the exact PyTorch-module semantics."""
    x32 = x.astype(jnp.float32)
    w32 = weight.astype(jnp.float32)
    xn = x32 / jnp.maximum(jnp.linalg.norm(x32, axis=1, keepdims=True), _EPS)
    wn = w32 / jnp.maximum(jnp.linalg.norm(w32, axis=1, keepdims=True), _EPS)
    cosine = xn @ wn.T
    sine = jnp.sqrt(jnp.clip(1.0 - cosine * cosine, 0.0, 1.0))
    phi = cosine * math.cos(m) - sine * math.sin(m)
    if easy_margin:
        phi = jnp.where(cosine > 0, phi, cosine)
    else:
        th = math.cos(math.pi - m)
        mm = math.sin(math.pi - m) * m
        phi = jnp.where(cosine - th > 0, phi, cosine - mm)
    one_hot = jax.nn.one_hot(label, weight.shape[0], dtype=jnp.float32)
    return (one_hot * phi + (1.0 - one_hot) * cosine) * s


if __name__ == "__main__":
    embedding_size = 32
    class_num = 256          # 2 class tiles of 128 -> exercises the tiled grid
    batch = 8

    key = jax.random.PRNGKey(0)
    k_w, k_x, k_l = jax.random.split(key, 3)

    weight = xavier_uniform(k_w, class_num, embedding_size)            # (C, E)
    x = jax.random.normal(k_x, (batch, embedding_size), jnp.float32)   # (B, E)
    label = jax.random.randint(k_l, (batch,), 0, class_num, jnp.int32)

    ref = _arcface_reference(x, weight, label, s=32.0, m=0.5, easy_margin=False)

    # Default path: f32 weight streamed + normalized in-kernel.
    out = arcface_forward(x, weight, label, s=32.0, m=0.5, easy_margin=False)
    out = jax.block_until_ready(out)
    assert out.shape == (batch, class_num)
    assert out.dtype == jnp.float32
    assert bool(jnp.all(jnp.isfinite(out)))
    # bf16 MXU rounding gives <~0.3 abs error at s=32; a margin-branch flip
    # would show up as >~3, so 1.0 is a meaningful gate.
    err = float(jnp.max(jnp.abs(out - ref)))
    assert err < 1.0, f"max abs err vs reference: {err}"

    # Long-lived-weight fast path: pre-normalized bf16 weight, no in-kernel norm.
    w_pre = prenormalize_weight(weight)
    out2 = arcface_forward(x, w_pre, label, s=32.0, m=0.5, easy_margin=False,
                           weight_prenormalized=True)
    out2 = jax.block_until_ready(out2)
    err2 = float(jnp.max(jnp.abs(out2 - ref)))
    assert err2 < 1.0, f"max abs err (prenormalized path) vs reference: {err2}"

    print("KERNEL_OK")
</pallas_src>

<mosaic_0001>
module attributes {stable_mosaic.version = 11 : i64} {
  func.func @kernel(%arg0: i32, %arg1: i32, %arg2: memref<8x32xbf16, #tpu.memory_space<vmem>>, %arg3: memref<128x32xf32, #tpu.memory_space<vmem>>, %arg4: memref<8x1xi32, #tpu.memory_space<vmem>>, %arg5: memref<8x128xf32, #tpu.memory_space<vmem>>) attributes {dimension_semantics = [#tpu.dimension_semantics<parallel>, #tpu.dimension_semantics<parallel>], iteration_bounds = array<i64: 2, 1>, scalar_prefetch = 0 : i64, scratch_operands = 0 : i64, tpu.core_type = #tpu.core_type<tc>, window_params = [{transform_indices = @transform_0, window_bounds = array<i64: 8, 32>}, {transform_indices = @transform_1, window_bounds = array<i64: 128, 32>}, {transform_indices = @transform_2, window_bounds = array<i64: 8, 1>}, {transform_indices = @transform_3, window_bounds = array<i64: 8, 128>}]} {
    %c0 = arith.constant 0 : index
    %c0_0 = arith.constant 0 : index
    %0 = vector.load %arg2[%c0, %c0_0] : memref<8x32xbf16, #tpu.memory_space<vmem>>, vector<8x32xbf16>
    %c0_1 = arith.constant 0 : index
    %c0_2 = arith.constant 0 : index
    %1 = vector.load %arg4[%c0_1, %c0_2] : memref<8x1xi32, #tpu.memory_space<vmem>>, vector<8x1xi32>
    %c0_3 = arith.constant 0 : index
    %c0_4 = arith.constant 0 : index
    %2 = vector.load %arg3[%c0_3, %c0_4] : memref<128x32xf32, #tpu.memory_space<vmem>>, vector<128x32xf32>
    %3 = arith.mulf %2, %2 : vector<128x32xf32>
    %cst = arith.constant dense<0.000000e+00> : vector<128xf32>
    %4 = vector.multi_reduction <add>, %3, %cst [1] : vector<128x32xf32> to vector<128xf32>
    %5 = vector.shape_cast %4 : vector<128xf32> to vector<128x1xf32>
    %cst_5 = arith.constant 1.000000e-24 : f32
    %6 = vector.broadcast %cst_5 : f32 to vector<128x1xf32>
    %7 = arith.maximumf %5, %6 : vector<128x1xf32>
    %8 = math.rsqrt %7 : vector<128x1xf32>
    %9 = vector.broadcast %8 : vector<128x1xf32> to vector<128x32xf32>
    %10 = arith.mulf %2, %9 : vector<128x32xf32>
    %11 = arith.truncf %10 : vector<128x32xf32> to vector<128x32xbf16>
    %cst_6 = arith.constant dense<0.000000e+00> : vector<8x128xf32>
    %12 = tpu.matmul %0, %11, %cst_6 {dimension_numbers = #tpu.dot_dimension_numbers<[1], [1], [0], [0], [0, 0, 1, 0], [], []>} : vector<8x32xbf16>, vector<128x32xbf16>, vector<8x128xf32> -> vector<8x128xf32>
    %c128_i32 = arith.constant 128 : i32
    %13 = arith.muli %arg0, %c128_i32 : i32
    %14 = vector.broadcast %13 : i32 to vector<8x1xi32>
    %15 = arith.subi %1, %14 : vector<8x1xi32>
    %16 = tpu.iota {dimensions = array<i32: 1>} : vector<8x128xi32>
    %17 = vector.broadcast %15 : vector<8x1xi32> to vector<8x128xi32>
    %18 = arith.cmpi eq, %16, %17 : vector<8x128xi32>
    %cst_7 = arith.constant 0.000000e+00 : f32
    %19 = vector.broadcast %cst_7 : f32 to vector<8x128xf32>
    %20 = arith.select %18, %12, %19 : vector<8x128xi1>, vector<8x128xf32>
    %cst_8 = arith.constant dense<0.000000e+00> : vector<8xf32>
    %21 = vector.multi_reduction <add>, %20, %cst_8 [1] : vector<8x128xf32> to vector<8xf32>
    %22 = vector.shape_cast %21 : vector<8xf32> to vector<8x1xf32>
    %23 = arith.mulf %22, %22 : vector<8x1xf32>
    %cst_9 = arith.constant 1.000000e+00 : f32
    %24 = vector.broadcast %cst_9 : f32 to vector<8x1xf32>
    %25 = arith.subf %24, %23 : vector<8x1xf32>
    %cst_10 = arith.constant 0.000000e+00 : f32
    %cst_11 = arith.constant 1.000000e+00 : f32
    %26 = vector.broadcast %cst_10 : f32 to vector<8x1xf32>
    %27 = arith.maximumf %26, %25 : vector<8x1xf32>
    %28 = vector.broadcast %cst_11 : f32 to vector<8x1xf32>
    %29 = arith.minimumf %28, %27 : vector<8x1xf32>
    %30 = math.sqrt %29 : vector<8x1xf32>
    %cst_12 = arith.constant 0.87758255 : f32
    %31 = vector.broadcast %cst_12 : f32 to vector<8x1xf32>
    %32 = arith.mulf %22, %31 : vector<8x1xf32>
    %cst_13 = arith.constant 0.47942555 : f32
    %33 = vector.broadcast %cst_13 : f32 to vector<8x1xf32>
    %34 = arith.mulf %30, %33 : vector<8x1xf32>
    %35 = arith.subf %32, %34 : vector<8x1xf32>
    %cst_14 = arith.constant -0.87758255 : f32
    %36 = vector.broadcast %cst_14 : f32 to vector<8x1xf32>
    %37 = arith.subf %22, %36 : vector<8x1xf32>
    %cst_15 = arith.constant 0.000000e+00 : f32
    %38 = vector.broadcast %cst_15 : f32 to vector<8x1xf32>
    %39 = arith.cmpf ogt, %37, %38 : vector<8x1xf32>
    %cst_16 = arith.constant 0.239712775 : f32
    %40 = vector.broadcast %cst_16 : f32 to vector<8x1xf32>
    %41 = arith.subf %22, %40 : vector<8x1xf32>
    %42 = arith.select %39, %35, %41 : vector<8x1xi1>, vector<8x1xf32>
    %43 = vector.shape_cast %42 : vector<8x1xf32> to vector<8x1xf32>
    %44 = vector.broadcast %43 : vector<8x1xf32> to vector<8x128xf32>
    %45 = arith.select %18, %44, %12 : vector<8x128xi1>, vector<8x128xf32>
    %cst_17 = arith.constant 3.200000e+01 : f32
    %46 = vector.broadcast %cst_17 : f32 to vector<8x128xf32>
    %47 = arith.mulf %45, %46 : vector<8x128xf32>
    %c0_18 = arith.constant 0 : index
    %c0_19 = arith.constant 0 : index
    %48 = vector.load %arg5[%c0_18, %c0_19] : memref<8x128xf32, #tpu.memory_space<vmem>>, vector<8x128xf32>
    tpu.vector_store %arg5[%c0_18, %c0_19], %47 {strides = array<i32>} : memref<8x128xf32, #tpu.memory_space<vmem>>, vector<8x128xf32>,
    return
  }
  func.func @transform_0(%arg0: i32, %arg1: i32) -> (i32, i32) {
    %c0_i32 = arith.constant 0 : i32
    %c0_i32_0 = arith.constant 0 : i32
    return %arg1, %c0_i32 : i32, i32
  }
  func.func @transform_1(%arg0: i32, %arg1: i32) -> (i32, i32) {
    %c0_i32 = arith.constant 0 : i32
    %c0_i32_0 = arith.constant 0 : i32
    return %arg0, %c0_i32 : i32, i32
  }
  func.func @transform_2(%arg0: i32, %arg1: i32) -> (i32, i32) {
    %c0_i32 = arith.constant 0 : i32
    %c0_i32_0 = arith.constant 0 : i32
    return %arg1, %c0_i32 : i32, i32
  }
  func.func @transform_3(%arg0: i32, %arg1: i32) -> (i32, i32) {
    %c0_i32 = arith.constant 0 : i32
    return %arg1, %arg0 : i32, i32
  }
}

</mosaic_0001>

<llo_original>
// kernel: tpu_custom_call.1
$region0: #{tpu_custom_call.1}
  #allocation0 [shape = 'u32[]', space=smem, size = 0x4, offset = 0x4, fixed_abs, tag = 'smem constant byte address 0x4 - core index']
  #allocation1 [shape = 'u32[144,128]{1,0:T(1,128)}', space=vmem, size = 0x12000, scoped, tag = 'internal scratch']
  %s0 = inlined_call_operand.vmem [shape: bf16[8,32], index: 0, kind: input, shape index: {}]
  %s1 = inlined_call_operand.vmem [shape: f32[256,32], index: 1, kind: input, shape index: {}]
  %s2 = inlined_call_operand.vmem [shape: s32[8,1], index: 2, kind: input, shape index: {}]
  %s3 = inlined_call_operand.hbm [shape: f32[8,256], index: 3, kind: output, shape index: {}]
  %s4 = sld [smem:[#allocation0]]
  $region45: #{tpu_custom_call.1} parent=0
    _
  %s6 = ssub.s32 1, %s4
  %s7 = scalar_select 0, %s6, %s4
  $region1: #{tpu_custom_call.1} parent=0
    #allocation2 [shape = 'u8[8192]{0}', space=vmem, size = 0x2000, scoped, tag = 'output window, operand 0']
    #allocation3 [shape = 's32[2]{0}', space=sflag, size = 0x8, scoped, tag = 'scoped memory for tpu_custom_call.1']
    %8 = vsyncpa [#allocation3], 0
    %s9 = scalar_lea.sflag [#allocation3], 1
    %10 = vsyncpa %s9, 0
    loop: start=0, step=1, limit=4
    $region2: #{tpu_custom_call.1} parent=1 // loop_pre_header
      _
    $region3: #{tpu_custom_call.1} parent=1 // loop_header
      %s12 = sphi 0, %s16
      %p13 = scmp.ge.s32.totalorder %s12, 4
      %s19 = sphi 0, %s31
      %s20 = sphi 0, %s27
      %s21 = sphi 0, %s19
      %s22 = sphi 0, %s20
      %s23 = sphi 0, %s21
      %s24 = sphi 0, %s22
      %s34 = sphi 0, %s36
      %s37 = sphi 0, %s34
      %s38 = sphi 0, %s37
      %s54 = sphi 0, %s38
      %s60 = sphi 0, %s62
      %s63 = sphi 0, %s60
      %s64 = sphi 0, %s63
      %s80 = sphi 0, %s64
      %s86 = sphi 0, %s88
      %s89 = sphi 0, %s86
      %s90 = sphi 0, %s89
      %s106 = sphi 0, %s90
      %s114 = sphi 0, %s116
      %s117 = sphi 0, %s114
      %s118 = sphi 0, %s117
      %s134 = sphi 0, %s118
    $region4: #{tpu_custom_call.1} parent=1 // loop_header_branch
      %15 = sbr.rel (%p13) target = $region8
    $region5: #{tpu_custom_call.1} parent=1 // loop_body
      %s17 = ssub.s32 %s12, 1
      %s18 = ssub.s32 %s12, 2
      %s25 = sadd.s32 1, %s20
      %p26 = scmp.ge.s32.totalorder %s25, 1
      %s27 = scalar_select %p26, 0, %s25
      %s28 = sadd.s32 1, %s19
      %s29 = scalar_select %p26, %s28, %s19
      %p30 = scmp.ge.s32.totalorder %s29, 2
      %s31 = scalar_select %p30, 0, %s29
      %s32 = ssub.s32 %s20, %s27
      %p33 = scmp.eq.s32.totalorder %s32, 0
      %s35 = sadd.s32 %s34, 1
      %s36 = scalar_select %p33, %s34, %s35
      %p39 = pneg %p33
      %p40 = scmp.eq.s32.totalorder %s12, 1
      %p41 = por %p39, %p40
      %p42 = scmp.ne.s32.totalorder %s34, %s37
      %p43 = scmp.eq.s32.totalorder %s12, 0
      %p44 = por %p42, %p43
      %p45 = scmp.ne.s32.totalorder %s34, %s37
      %p46 = scmp.eq.s32.totalorder %s17, 1
      %p47 = por %p45, %p46
      %p48 = scmp.ne.s32.totalorder %s37, %s38
      %p49 = scmp.eq.s32.totalorder %s17, 0
      %p50 = por %p48, %p49
      %p51 = scmp.ne.s32.totalorder %s37, %s38
      %p52 = scmp.eq.s32.totalorder %s18, 1
      %p53 = por %p51, %p52
      %p55 = scmp.ne.s32.totalorder %s38, %s54
      %p56 = scmp.eq.s32.totalorder %s18, 0
      %p57 = por %p55, %p56
      %s58 = ssub.s32 %s19, %s31
      %p59 = scmp.eq.s32.totalorder %s58, 0
      %s61 = sadd.s32 %s60, 1
      %s62 = scalar_select %p59, %s60, %s61
      %p65 = pneg %p59
      %p66 = scmp.eq.s32.totalorder %s12, 1
      %p67 = por %p65, %p66
      %p68 = scmp.ne.s32.totalorder %s60, %s63
      %p69 = scmp.eq.s32.totalorder %s12, 0
      %p70 = por %p68, %p69
      %p71 = scmp.ne.s32.totalorder %s60, %s63
      %p72 = scmp.eq.s32.totalorder %s17, 1
      %p73 = por %p71, %p72
      %p74 = scmp.ne.s32.totalorder %s63, %s64
      %p75 = scmp.eq.s32.totalorder %s17, 0
      %p76 = por %p74, %p75
      %p77 = scmp.ne.s32.totalorder %s63, %s64
      %p78 = scmp.eq.s32.totalorder %s18, 1
      %p79 = por %p77, %p78
      %p81 = scmp.ne.s32.totalorder %s64, %s80
      %p82 = scmp.eq.s32.totalorder %s18, 0
      %p83 = por %p81, %p82
      %s84 = ssub.s32 %s20, %s27
      %p85 = scmp.eq.s32.totalorder %s84, 0
      %s87 = sadd.s32 %s86, 1
      %s88 = scalar_select %p85, %s86, %s87
      %p91 = pneg %p85
      %p92 = scmp.eq.s32.totalorder %s12, 1
      %p93 = por %p91, %p92
      %p94 = scmp.ne.s32.totalorder %s86, %s89
      %p95 = scmp.eq.s32.totalorder %s12, 0
      %p96 = por %p94, %p95
      %p97 = scmp.ne.s32.totalorder %s86, %s89
      %p98 = scmp.eq.s32.totalorder %s17, 1
      %p99 = por %p97, %p98
      %p100 = scmp.ne.s32.totalorder %s89, %s90
      %p101 = scmp.eq.s32.totalorder %s17, 0
      %p102 = por %p100, %p101
      %p103 = scmp.ne.s32.totalorder %s89, %s90
      %p104 = scmp.eq.s32.totalorder %s18, 1
      %p105 = por %p103, %p104
      %p107 = scmp.ne.s32.totalorder %s90, %s106
      %p108 = scmp.eq.s32.totalorder %s18, 0
      %p109 = por %p107, %p108
      %s110 = ssub.s32 %s20, %s27
      %s111 = ssub.s32 %s19, %s31
      %s112 = sor.u32 %s110, %s111
      %p113 = scmp.eq.s32.totalorder %s112, 0
      %s115 = sadd.s32 %s114, 1
      %s116 = scalar_select %p113, %s114, %s115
      %p119 = pneg %p113
      %p120 = scmp.eq.s32.totalorder %s12, 1
      %p121 = por %p119, %p120
      %p122 = scmp.ne.s32.totalorder %s114, %s117
      %p123 = scmp.eq.s32.totalorder %s12, 0
      %p124 = por %p122, %p123
      %p125 = scmp.ne.s32.totalorder %s114, %s117
      %p126 = scmp.eq.s32.totalorder %s17, 1
      %p127 = por %p125, %p126
      %p128 = scmp.ne.s32.totalorder %s117, %s118
      %p129 = scmp.eq.s32.totalorder %s17, 0
      %p130 = por %p128, %p129
      %p131 = scmp.ne.s32.totalorder %s117, %s118
      %p132 = scmp.eq.s32.totalorder %s18, 1
      %p133 = por %p131, %p132
      %p135 = scmp.ne.s32.totalorder %s118, %s134
      %p136 = scmp.eq.s32.totalorder %s18, 0
      %p137 = por %p135, %p136
      %p138 = scmp.le.s32.totalorder 1, %s12
      %p139 = scmp.lt.s32.totalorder %s12, 3
      %p140 = pnand %p138, %p139
      %p141 = pneg %p140
      // Predicated region
      $region9: #{tpu_custom_call.1} parent=5 // pred_check
        _
      $region10: #{tpu_custom_call.1} parent=5 // pred_check_branch
        %143 = sbr.rel (%p140) target = $region12
      $region11: #{tpu_custom_call.1} parent=5 // pred_region
        %s144 = ssub.s32 %s12, 1
        // Predicated region
        $region13: #{tpu_custom_call.1} parent=11 // pred_check
          %p145 = pneg %p50
        $region14: #{tpu_custom_call.1} parent=11 // pred_check_branch
          %147 = sbr.rel (%p145) target = $region16
        $region15: #{tpu_custom_call.1} parent=11 // pred_region
          %p148 = scmp.lt.s32.totalorder %s22, 0
          %s149 = scalar_select %p148, %s22, 0
          %s150 = smul.addr %s149, 4
          %s151 = scalar_lea.vmem %s0, %s150
        $region16: #{tpu_custom_call.1} parent=11 // pred_fallthru
          _
        // Predicated region
        $region17: #{tpu_custom_call.1} parent=11 // pred_check
          %p152 = pneg %p102
        $region18: #{tpu_custom_call.1} parent=11 // pred_check_branch
          %154 = sbr.rel (%p152) target = $region20
        $region19: #{tpu_custom_call.1} parent=11 // pred_region
          %p155 = scmp.lt.s32.totalorder %s22, 0
          %s156 = scalar_select %p155, %s22, 0
          %s157 = smul.addr %s156, 8
          %s158 = scalar_lea.vmem %s2, %s157
        $region20: #{tpu_custom_call.1} parent=11 // pred_fallthru
          _
      $region12: #{tpu_custom_call.1} parent=5 // pred_fallthru
        _
      %p159 = scmp.lt.s32.totalorder %s12, 2
      // Predicated region
      $region21: #{tpu_custom_call.1} parent=5 // pred_check
        %p160 = pneg %p159
      $region22: #{tpu_custom_call.1} parent=5 // pred_check_branch
        %162 = sbr.rel (%p160) target = $region24
      $region23: #{tpu_custom_call.1} parent=5 // pred_region
        // Predicated region
        $region25: #{tpu_custom_call.1} parent=23 // pred_check
          %p163 = pneg %p70
        $region26: #{tpu_custom_call.1} parent=23 // pred_check_branch
          %165 = sbr.rel (%p163) target = $region28
        $region27: #{tpu_custom_call.1} parent=23 // pred_region
          %s166 = smul.u32 16, %s19
          %p167 = scmp.lt.s32.totalorder %s166, 31
          %s168 = scalar_select %p167, %s166, 31
          %s169 = smul.addr %s168, 8
          %s170 = scalar_lea.vmem %s1, %s169
          %s171 = smul.u32 16, %s19
        $region28: #{tpu_custom_call.1} parent=23 // pred_fallthru
          _
      $region24: #{tpu_custom_call.1} parent=5 // pred_fallthru
        _
      %p172 = scmp.le.s32.totalorder 1, %s12
      %p173 = scmp.lt.s32.totalorder %s12, 3
      %p174 = pnand %p172, %p173
      %p175 = pneg %p174
      // Predicated region
      $region29: #{tpu_custom_call.1} parent=5 // pred_check
        _
      $region30: #{tpu_custom_call.1} parent=5 // pred_check_branch
        %177 = sbr.rel (%p174) target = $region32
      $region31: #{tpu_custom_call.1} parent=5 // pred_region
        %s178 = ssub.s32 %s12, 1
        %p179 = scmp.lt.s32.totalorder %s22, 0
        %s180 = scalar_select %p179, %s22, 0
        %s181 = smul.addr %s180, 4
        %s182 = scalar_lea.vmem %s0, %s181
        %p183 = pneg %p50
        %p184 = pneg %p47
        %s185 = smul.u32 16, %s21
        %p186 = scmp.lt.s32.totalorder %s185, 31
        %s187 = scalar_select %p186, %s185, 31
        %s188 = smul.addr %s187, 8
        %s189 = scalar_lea.vmem %s1, %s188
        %p190 = pneg %p76
        %p191 = pneg %p73
        %p192 = scmp.lt.s32.totalorder %s22, 0
        %s193 = scalar_select %p192, %s22, 0
        %s194 = smul.addr %s193, 8
        %s195 = scalar_lea.vmem %s2, %s194
        %p196 = pneg %p102
        %p197 = pneg %p99
        %p198 = pneg %p130
        %p199 = pneg %p127
        %s200 = sand.u32 %s117, 1
        %s201 = scalar_lea.sflag [#allocation3], %s200
        %s202 = sand.u32 %s117, 1
        %s203 = smul.addr %s202, 8
        %s204 = scalar_lea.vmem [#allocation2], %s203
        %p205 = scmp.lt.s32.totalorder %s22, 0
        %s206 = scalar_select %p205, %s22, 0
        %s207 = smul.addr %s206, 4
        %s208 = scalar_lea.vmem %s0, %s207
        %s209 = smul.u32 16, %s21
        %p210 = scmp.lt.s32.totalorder %s209, 31
        %s211 = scalar_select %p210, %s209, 31
        %s212 = smul.addr %s211, 8
        %s213 = scalar_lea.vmem %s1, %s212
        %s214 = smul.u32 16, %s21
        %p215 = scmp.lt.s32.totalorder %s22, 0
        %s216 = scalar_select %p215, %s22, 0
        %s217 = smul.addr %s216, 8
        %s218 = scalar_lea.vmem %s2, %s217
        %v220 = vld [vmem:[%s208] sm:$0xf]
        %v221 = vld [vmem:[%s218] sm:$0xff]
        %v222 = vld [vmem:[%s213] sm:$0xff]
        %v223 = vld [vmem:[%s213 + $0x8] sm:$0xff]
        %v224 = vld [vmem:[%s213 + $0x10] sm:$0xff]
        %v225 = vld [vmem:[%s213 + $0x18] sm:$0xff]
        %v226 = vld [vmem:[%s213 + $0x20] sm:$0xff]
        %v227 = vld [vmem:[%s213 + $0x28] sm:$0xff]
        %v228 = vld [vmem:[%s213 + $0x30] sm:$0xff]
        %v229 = vld [vmem:[%s213 + $0x38] sm:$0xff]
        %v230 = vld [vmem:[%s213 + $0x40] sm:$0xff]
        %v231 = vld [vmem:[%s213 + $0x48] sm:$0xff]
        %v232 = vld [vmem:[%s213 + $0x50] sm:$0xff]
        %v233 = vld [vmem:[%s213 + $0x58] sm:$0xff]
        %v234 = vld [vmem:[%s213 + $0x60] sm:$0xff]
        %v235 = vld [vmem:[%s213 + $0x68] sm:$0xff]
        %v236 = vld [vmem:[%s213 + $0x70] sm:$0xff]
        %v237 = vld [vmem:[%s213 + $0x78] sm:$0xff]
        %v238 = vmul.f32 %v222, %v222
        %v239 = vmul.f32 %v223, %v223
        %v240 = vmul.f32 %v224, %v224
        %v241 = vmul.f32 %v225, %v225
        %v242 = vmul.f32 %v226, %v226
        %v243 = vmul.f32 %v227, %v227
        %v244 = vmul.f32 %v228, %v228
        %v245 = vmul.f32 %v229, %v229
        %v246 = vmul.f32 %v230, %v230
        %v247 = vmul.f32 %v231, %v231
        %v248 = vmul.f32 %v232, %v232
        %v249 = vmul.f32 %v233, %v233
        %v250 = vmul.f32 %v234, %v234
        %v251 = vmul.f32 %v235, %v235
        %v252 = vmul.f32 %v236, %v236
        %v253 = vmul.f32 %v237, %v237
        %vm254 = vcmask 261120
        %v255 = vsel %vm254, %v238, 0.0
        %256 = vadd.xlane.f32.xlu0 %v255
        %v257 = vpop.xlane.xlu0 %256
        %v258 = vsel %vm254, %v239, 0.0
        %259 = vadd.xlane.f32.xlu0 %v258
        %v260 = vpop.xlane.xlu0 %259
        %v261 = vsel %vm254, %v240, 0.0
        %262 = vadd.xlane.f32.xlu0 %v261
        %v263 = vpop.xlane.xlu0 %262
        %v264 = vsel %vm254, %v241, 0.0
        %265 = vadd.xlane.f32.xlu0 %v264
        %v266 = vpop.xlane.xlu0 %265
        %v267 = vsel %vm254, %v242, 0.0
        %268 = vadd.xlane.f32.xlu0 %v267
        %v269 = vpop.xlane.xlu0 %268
        %v270 = vsel %vm254, %v243, 0.0
        %271 = vadd.xlane.f32.xlu0 %v270
        %v272 = vpop.xlane.xlu0 %271
        %v273 = vsel %vm254, %v244, 0.0
        %274 = vadd.xlane.f32.xlu0 %v273
        %v275 = vpop.xlane.xlu0 %274
        %v276 = vsel %vm254, %v245, 0.0
        %277 = vadd.xlane.f32.xlu0 %v276
        %v278 = vpop.xlane.xlu0 %277
        %v279 = vsel %vm254, %v246, 0.0
        %280 = vadd.xlane.f32.xlu0 %v279
        %v281 = vpop.xlane.xlu0 %280
        %v282 = vsel %vm254, %v247, 0.0
        %283 = vadd.xlane.f32.xlu0 %v282
        %v284 = vpop.xlane.xlu0 %283
        %v285 = vsel %vm254, %v248, 0.0
        %286 = vadd.xlane.f32.xlu0 %v285
        %v287 = vpop.xlane.xlu0 %286
        %v288 = vsel %vm254, %v249, 0.0
        %289 = vadd.xlane.f32.xlu0 %v288
        %v290 = vpop.xlane.xlu0 %289
        %v291 = vsel %vm254, %v250, 0.0
        %292 = vadd.xlane.f32.xlu0 %v291
        %v293 = vpop.xlane.xlu0 %292
        %v294 = vsel %vm254, %v251, 0.0
        %295 = vadd.xlane.f32.xlu0 %v294
        %v296 = vpop.xlane.xlu0 %295
        %v297 = vsel %vm254, %v252, 0.0
        %298 = vadd.xlane.f32.xlu0 %v297
        %v299 = vpop.xlane.xlu0 %298
        %v300 = vsel %vm254, %v253, 0.0
        %301 = vadd.xlane.f32.xlu0 %v300
        %v302 = vpop.xlane.xlu0 %301
        %v303 = vmax.f32 %v257, 1e-24
        %v304 = vmax.f32 %v260, 1e-24
        %v305 = vmax.f32 %v263, 1e-24
        %v306 = vmax.f32 %v266, 1e-24
        %v307 = vmax.f32 %v269, 1e-24
        %v308 = vmax.f32 %v272, 1e-24
        %v309 = vmax.f32 %v275, 1e-24
        %v310 = vmax.f32 %v278, 1e-24
        %v311 = vmax.f32 %v281, 1e-24
        %v312 = vmax.f32 %v284, 1e-24
        %v313 = vmax.f32 %v287, 1e-24
        %v314 = vmax.f32 %v290, 1e-24
        %v315 = vmax.f32 %v293, 1e-24
        %v316 = vmax.f32 %v296, 1e-24
        %v317 = vmax.f32 %v299, 1e-24
        %v318 = vmax.f32 %v302, 1e-24
        %v319 = vrsqrt.pop %v303
        %v320 = vrsqrt.pop %v304
        %v321 = vrsqrt.pop %v305
        %v322 = vrsqrt.pop %v306
        %v323 = vrsqrt.pop %v307
        %v324 = vrsqrt.pop %v308
        %v325 = vrsqrt.pop %v309
        %v326 = vrsqrt.pop %v310
        %v327 = vrsqrt.pop %v311
        %v328 = vrsqrt.pop %v312
        %v329 = vrsqrt.pop %v313
        %v330 = vrsqrt.pop %v314
        %v331 = vrsqrt.pop %v315
        %v332 = vrsqrt.pop %v316
        %v333 = vrsqrt.pop %v317
        %v334 = vrsqrt.pop %v318
        %v335 = vmul.f32 %v222, %v319
        %v336 = vmul.f32 %v223, %v320
        %v337 = vmul.f32 %v224, %v321
        %v338 = vmul.f32 %v225, %v322
        %v339 = vmul.f32 %v226, %v323
        %v340 = vmul.f32 %v227, %v324
        %v341 = vmul.f32 %v228, %v325
        %v342 = vmul.f32 %v229, %v326
        %v343 = vmul.f32 %v230, %v327
        %v344 = vmul.f32 %v231, %v328
        %v345 = vmul.f32 %v232, %v329
        %v346 = vmul.f32 %v233, %v330
        %v347 = vmul.f32 %v234, %v331
        %v348 = vmul.f32 %v235, %v332
        %v349 = vmul.f32 %v236, %v333
        %v350 = vmul.f32 %v237, %v334
        %v351 = vpack.c.bf16 %v336, %v335
        %v352 = vpack.c.bf16 %v338, %v337
        %v353 = vpack.c.bf16 %v340, %v339
        %v354 = vpack.c.bf16 %v342, %v341
        %v355 = vpack.c.bf16 %v344, %v343
        %v356 = vpack.c.bf16 %v346, %v345
        %v357 = vpack.c.bf16 %v348, %v347
        %v358 = vpack.c.bf16 %v350, %v349
        %v360 = vsel %vm254, %v220, 0
        %v363 = vsel %vm254, %v351, 0
        %v366 = vsel %vm254, %v352, 0
        %v369 = vsel %vm254, %v353, 0
        %v372 = vsel %vm254, %v354, 0
        %v375 = vsel %vm254, %v355, 0
        %v378 = vsel %vm254, %v356, 0
        %v381 = vsel %vm254, %v357, 0
        %v384 = vsel %vm254, %v358, 0
        %386 = vmatprep.subr.bf16.mxu0 0
        %387 = vmatpush1.bf16.xpose.msra.mxu0 %v384
        %388 = vmatprep.subr.bf16.mxu0 0
        %389 = vmatpush1.bf16.xpose.msra.mxu0 %v381
        %390 = vmatprep.subr.bf16.mxu0 0
        %391 = vmatpush1.bf16.xpose.msra.mxu0 %v378
        %392 = vmatprep.subr.bf16.mxu0 0
        %393 = vmatpush1.bf16.xpose.msra.mxu0 %v375
        %394 = vmatprep.subr.bf16.mxu0 0
        %395 = vmatpush1.bf16.xpose.msra.mxu0 %v372
        %396 = vmatprep.subr.bf16.mxu0 0
        %397 = vmatpush1.bf16.xpose.msra.mxu0 %v369
        %398 = vmatprep.subr.bf16.mxu0 0
        %399 = vmatpush1.bf16.xpose.msra.mxu0 %v366
        %400 = vmatprep.subr.bf16.mxu0 0
        %401 = vmatpush1.bf16.xpose.msra.mxu0 %v363
        %402 = vmatprep.subr.bf16.mxu0 0
        %403 = vmatpush2.bf16.xpose.msra.mxu0 0
        %404 = vmatprep.subr.bf16.mxu0 0
        %405 = vmatpush2.bf16.xpose.msra.mxu0 0
        %406 = vmatprep.subr.bf16.mxu0 0
        %407 = vmatpush2.bf16.xpose.msra.mxu0 0
        %408 = vmatprep.subr.bf16.mxu0 0
        %409 = vmatpush2.bf16.xpose.msra.mxu0 0
        %410 = vmatprep.subr.bf16.mxu0 0
        %411 = vmatpush2.bf16.xpose.msra.mxu0 0
        %412 = vmatprep.subr.bf16.mxu0 0
        %413 = vmatpush2.bf16.xpose.msra.mxu0 0
        %414 = vmatprep.subr.bf16.mxu0 0
        %415 = vmatpush2.bf16.xpose.msra.mxu0 0
        %416 = vmatprep.subr.bf16.mxu0 0
        %417 = vmatpush2.bf16.xpose.msra.mxu0 0
        %418 = vmatprep.mubr.bf16.mxu0 0
        %419 = vmatmul.mubr.bf16.gmra.mxu0 %v360
        %v420 = vpop.f32.mrf.mxu0
        %v421 = vadd.f32 0.0, %v420
        %v422 = vpop.f32.mrf.mxu0
        %v423 = vpop.f32.mrf.mxu0
        %v424 = vpop.f32.mrf.mxu0
        %425 = vdwg.mxu0
        %s426 = smul.u32 %s21, 128
        %v427 = vstv %s426
        %v428 = vsub.s32 %v221, %v427
        %v429 = vlaneseq
        %v430 = vand.u32 %v429, 127
        %431 = vset.pattern.permute.xlu0 0
        %432 = vperm.xlu0 %431, %v428
        %v433 = vpop.permute.xlu0 %432
        %vm434 = vcmp.eq.s32.totalorder %v430, %v433
        %v435 = vsel %vm434, %v421, 0.0
        %436 = vadd.xlane.f32.xlu0 %v435
        %v437 = vpop.xlane.xlu0 %436
        %v438 = vmul.f32 %v437, %v437
        %v439 = vsub.f32 1.0, %v438
        %v440 = vmax.f32 %v439, 0.0
        %v441 = vmin.f32 %v440, 1.0
        %v442 = vrsqrt.pop %v441
        %v443 = vmul.f32 %v441, %v442
        %vm444 = vcmp.eq.f32.partialorder %v441, inf
        %v445 = vsel %vm444, %v441, %v443
        %vm446 = vcmp.eq.f32.partialorder %v441, 0.0
        %v447 = vand.u32 %v441, 2147483648
        %v448 = vsel %vm446, %v447, %v445
        %v449 = vmul.f32 %v437, 0.87758255
        %v450 = vmul.f32 %v448, 0.47942555
        %v451 = vsub.f32 %v449, %v450
        %v452 = vsub.f32 %v437, -0.87758255
        %vm453 = vcmp.gt.f32.partialorder %v452, 0.0
        %v454 = vsub.f32 %v437, 0.23971277
        %v455 = vsel %vm453, %v451, %v454
        %v456 = vsel %vm434, %v455, %v421
        %v457 = vmul.f32 %v456, 32.0
        %458 = vst [vmem:[%s204] sm:$0xff] %v457
        %s459 = sand.u32 %s117, 1
        %s460 = scalar_lea.sflag [#allocation3], %s459
        %s461 = sand.u32 %s117, 1
        %s462 = smul.addr %s461, 8
        %s463 = scalar_lea.vmem [#allocation2], %s462
        // Predicated region
        $region33: #{tpu_custom_call.1} parent=31 // pred_check
          %p464 = pneg %p127
        $region34: #{tpu_custom_call.1} parent=31 // pred_check_branch
          %466 = sbr.rel (%p464) target = $region36
        $region35: #{tpu_custom_call.1} parent=31 // pred_region
          %s468 = ssub.s32 128, 128
          %469 = vsyncadd %s460, %s468
          %s470 = smul.addr %s22, 2
          %s471 = sadd.s32 %s21, %s470
          %s472 = smul.addr %s471, 128
          %s473 = scalar_lea.hbm %s3, %s472
          %s475 = sshll.u32 %s463, 4
          %s476 = int_to_ptr.vmem [resolvable:$true] %s475
          %478 = dma.vmem_to_hbm [thread:$0]  %s476, 128, %s473, %s460
        $region36: #{tpu_custom_call.1} parent=31 // pred_fallthru
          _
      $region32: #{tpu_custom_call.1} parent=5 // pred_fallthru
        _
      %p479 = scmp.le.s32.totalorder 2, %s12
      // Predicated region
      $region37: #{tpu_custom_call.1} parent=5 // pred_check
        %p480 = pneg %p479
      $region38: #{tpu_custom_call.1} parent=5 // pred_check_branch
        %482 = sbr.rel (%p480) target = $region40
      $region39: #{tpu_custom_call.1} parent=5 // pred_region
        %s483 = ssub.s32 %s12, 2
        // Predicated region
        $region41: #{tpu_custom_call.1} parent=39 // pred_check
          %p484 = pneg %p133
        $region42: #{tpu_custom_call.1} parent=39 // pred_check_branch
          %486 = sbr.rel (%p484) target = $region44
        $region43: #{tpu_custom_call.1} parent=39 // pred_region
          %s487 = sand.u32 %s118, 1
          %s488 = scalar_lea.sflag [#allocation3], %s487
          %s489 = sand.u32 %s118, 1
          %s490 = smul.addr %s489, 8
          %s491 = scalar_lea.vmem [#allocation2], %s490
          %492 = dma.done %s488, 128
        $region44: #{tpu_custom_call.1} parent=39 // pred_fallthru
          _
      $region40: #{tpu_custom_call.1} parent=5 // pred_fallthru
        _
    $region6: #{tpu_custom_call.1} parent=1 // loop_footer
      %s16 = sadd.s32 1, %s12
    $region7: #{tpu_custom_call.1} parent=1 // loop_footer_branch
      %11 = sbr.rel target = $region3
    $region8: #{tpu_custom_call.1} parent=1 // loop_exit
      _
    %493 = vsyncpa [#allocation3], 1
    %s494 = scalar_lea.sflag [#allocation3], 1
    %495 = vsyncpa %s494, 1

</llo_original>
